<compile_context>
chip_gen: v5e
topology: v5e:2x2
jax: 0.10.0
libtpu: 0.0.40
codegen_flags: <defaults>
</compile_context>

<pallas_src>
import jax
import jax.numpy as jnp
from jax.experimental import pallas as pl
from jax.experimental.pallas import tpu as pltpu


def _linear_tanh_permute_mul_kernel(x_ref, w2_ref, w3_ref, b2_ref, b3_ref, o_ref):
    # x_ref : (B, S*K)    flattened input rows
    # w2_ref: (S*K, S*O)  block-diag weight producing v1  in (B, S*O) layout
    # w3_ref: (S*K, S*O)  block-diag weight producing v1ᵀ in (B, S*O) layout
    # b2_ref: (1, S*O)    bias[j] at flat index i*O+j
    # b3_ref: (1, S*O)    bias[i] at flat index i*O+j
    # o_ref : (B, S*O)    out[b, i*O+j] = tanh(v1[b,i,j]) * tanh(v1[b,j,i])
    xf = x_ref[...]
    # v1 (row-major (i, j) layout) and v1ᵀ via two tiny MXU dots with natural
    # (contraction-dim-first) weights; bias folded into the f32 accumulator.
    v1 = jnp.dot(xf, w2_ref[...], preferred_element_type=jnp.float32) + b2_ref[...]
    v1t = jnp.dot(xf, w3_ref[...], preferred_element_type=jnp.float32) + b3_ref[...]
    # v2 * v2.permute(0,2,1), assembled in one 2-D tile, single store.
    o_ref[...] = (jnp.tanh(v1) * jnp.tanh(v1t)).astype(o_ref.dtype)


def model_forward(x, w, b):
    B, S, K = x.shape
    O = w.shape[0]
    assert S == O, "v2 * v2.permute(0,2,1) requires seq == out_features"

    # One-time static parameter prep (plain XLA, outside the hot kernel):
    eye_s = jnp.eye(S, dtype=w.dtype)
    # w2[s*K+k, i*O+j] = W[j,k] * (s==i)  ->  (x_flat @ w2)[b, i*O+j] = v1[b,i,j]
    w2 = jnp.einsum("si,jk->skij", eye_s, w).reshape(S * K, S * O)
    # w3[s*K+k, i*O+j] = W[i,k] * (s==j)  ->  (x_flat @ w3)[b, i*O+j] = v1[b,j,i]
    w3 = jnp.einsum("sj,ik->skij", eye_s, w).reshape(S * K, S * O)
    b2 = jnp.tile(b, S).reshape(1, S * O)     # bias[j] at i*O+j
    b3 = jnp.repeat(b, O).reshape(1, S * O)   # bias[i] at i*O+j

    xf = x.reshape(B, S * K)
    out2d = pl.pallas_call(
        _linear_tanh_permute_mul_kernel,
        out_shape=jax.ShapeDtypeStruct((B, S * O), x.dtype),
        in_specs=[
            pl.BlockSpec(memory_space=pltpu.MemorySpace.VMEM),
            pl.BlockSpec(memory_space=pltpu.MemorySpace.VMEM),
            pl.BlockSpec(memory_space=pltpu.MemorySpace.VMEM),
            pl.BlockSpec(memory_space=pltpu.MemorySpace.VMEM),
            pl.BlockSpec(memory_space=pltpu.MemorySpace.VMEM),
        ],
        out_specs=pl.BlockSpec(memory_space=pltpu.MemorySpace.VMEM),
    )(xf, w2, w3, b2, b3)
    return out2d.reshape(B, S, O)


def _reference(x, w, b):
    v1 = jnp.einsum("bsk,ok->bso", x, w) + b[None, None, :]
    v2 = jnp.tanh(v1)
    v3 = jnp.transpose(v2, (0, 2, 1))
    return v2 * v3


if __name__ == "__main__":
    key = jax.random.PRNGKey(0)
    kx, kw, kb = jax.random.split(key, 3)

    B, S, K, O = 2, 2, 4, 2          # Linear(4, 2); seq must equal out_features
    x = jax.random.normal(kx, (B, S, K), dtype=jnp.float32)
    # Deterministic parameter init (PyTorch-style uniform(-1/sqrt(K), 1/sqrt(K)))
    bound = 1.0 / (K ** 0.5)
    w = jax.random.uniform(kw, (O, K), dtype=jnp.float32, minval=-bound, maxval=bound)
    b = jax.random.uniform(kb, (O,), dtype=jnp.float32, minval=-bound, maxval=bound)

    out = model_forward(x, w, b)
    out = jax.block_until_ready(out)

    ref = _reference(x, w, b)
    assert out.shape == (B, S, O)
    assert jnp.allclose(out, ref, atol=1e-5, rtol=1e-5), "mismatch vs reference"

    print("KERNEL_OK")
</pallas_src>

<mosaic_0001>
module attributes {stable_mosaic.version = 11 : i64} {
  func.func @_linear_tanh_permute_mul_kernel(%arg0: memref<2x8xf32, #tpu.memory_space<vmem>>, %arg1: memref<8x4xf32, #tpu.memory_space<vmem>>, %arg2: memref<8x4xf32, #tpu.memory_space<vmem>>, %arg3: memref<1x4xf32, #tpu.memory_space<vmem>>, %arg4: memref<1x4xf32, #tpu.memory_space<vmem>>, %arg5: memref<2x4xf32, #tpu.memory_space<vmem>>) attributes {dimension_semantics = [], scalar_prefetch = 0 : i64, scratch_operands = 0 : i64, tpu.core_type = #tpu.core_type<tc>} {
    %c0 = arith.constant 0 : index
    %c0_0 = arith.constant 0 : index
    %0 = vector.load %arg0[%c0, %c0_0] : memref<2x8xf32, #tpu.memory_space<vmem>>, vector<2x8xf32>
    %c0_1 = arith.constant 0 : index
    %c0_2 = arith.constant 0 : index
    %1 = vector.load %arg1[%c0_1, %c0_2] : memref<8x4xf32, #tpu.memory_space<vmem>>, vector<8x4xf32>
    %cst = arith.constant dense<0.000000e+00> : vector<2x4xf32>
    %2 = tpu.matmul %0, %1, %cst {dimension_numbers = #tpu.dot_dimension_numbers<[1], [0], [0], [1], [0, 0, 1, 1], [], []>} : vector<2x8xf32>, vector<8x4xf32>, vector<2x4xf32> -> vector<2x4xf32>
    %c0_3 = arith.constant 0 : index
    %c0_4 = arith.constant 0 : index
    %3 = vector.load %arg3[%c0_3, %c0_4] : memref<1x4xf32, #tpu.memory_space<vmem>>, vector<1x4xf32>
    %4 = vector.broadcast %3 : vector<1x4xf32> to vector<2x4xf32>
    %5 = arith.addf %2, %4 : vector<2x4xf32>
    %c0_5 = arith.constant 0 : index
    %c0_6 = arith.constant 0 : index
    %6 = vector.load %arg2[%c0_5, %c0_6] : memref<8x4xf32, #tpu.memory_space<vmem>>, vector<8x4xf32>
    %cst_7 = arith.constant dense<0.000000e+00> : vector<2x4xf32>
    %7 = tpu.matmul %0, %6, %cst_7 {dimension_numbers = #tpu.dot_dimension_numbers<[1], [0], [0], [1], [0, 0, 1, 1], [], []>} : vector<2x8xf32>, vector<8x4xf32>, vector<2x4xf32> -> vector<2x4xf32>
    %c0_8 = arith.constant 0 : index
    %c0_9 = arith.constant 0 : index
    %8 = vector.load %arg4[%c0_8, %c0_9] : memref<1x4xf32, #tpu.memory_space<vmem>>, vector<1x4xf32>
    %9 = vector.broadcast %8 : vector<1x4xf32> to vector<2x4xf32>
    %10 = arith.addf %7, %9 : vector<2x4xf32>
    %11 = math.tanh %5 : vector<2x4xf32>
    %12 = math.tanh %10 : vector<2x4xf32>
    %13 = arith.mulf %11, %12 : vector<2x4xf32>
    %c0_10 = arith.constant 0 : index
    %c0_11 = arith.constant 0 : index
    %14 = vector.load %arg5[%c0_10, %c0_11] : memref<2x4xf32, #tpu.memory_space<vmem>>, vector<2x4xf32>
    tpu.vector_store %arg5[%c0_10, %c0_11], %13 {strides = array<i32>} : memref<2x4xf32, #tpu.memory_space<vmem>>, vector<2x4xf32>,
    return
  }
}

</mosaic_0001>

<llo_original>
// kernel: tpu_custom_call.1
$region0: #{tpu_custom_call.1}
  #allocation0 [shape = 'u32[]', space=smem, size = 0x4, offset = 0x4, fixed_abs, tag = 'smem constant byte address 0x4 - core index']
  #allocation1 [shape = 'u32[72,128]{1,0:T(1,128)}', space=vmem, size = 0x9000, scoped, tag = 'internal scratch']
  %s0 = inlined_call_operand.vmem [shape: f32[2,8], index: 0, kind: input, shape index: {}]
  %s1 = inlined_call_operand.vmem [shape: f32[8,4], index: 1, kind: input, shape index: {}]
  %s2 = inlined_call_operand.vmem [shape: f32[8,4], index: 2, kind: input, shape index: {}]
  %s3 = inlined_call_operand.vmem [shape: f32[1,4], index: 3, kind: input, shape index: {}]
  %s4 = inlined_call_operand.vmem [shape: f32[1,4], index: 4, kind: input, shape index: {}]
  %s5 = inlined_call_operand.hbm [shape: f32[2,4], index: 5, kind: output, shape index: {}]
  %s6 = sld [smem:[#allocation0]]
  $region30: #{tpu_custom_call.1} parent=0
    _
  %s8 = ssub.s32 1, %s6
  %s9 = scalar_select 0, %s8, %s6
  $region1: #{tpu_custom_call.1} parent=0
    #allocation2 [shape = 'u8[1024]{0}', space=vmem, size = 0x400, scoped, tag = 'output window, operand 0, single buffered']
    #allocation3 [shape = 's32[1]{0}', space=sflag, size = 0x4, scoped, tag = 'scoped memory for tpu_custom_call.1']
    %10 = vsyncpa [#allocation3], 0
    // Predicated region
    $region2: #{tpu_custom_call.1} parent=1 // pred_check
      _
    $region3: #{tpu_custom_call.1} parent=1 // pred_check_branch
      %12 = sbr.rel (0) target = $region5
    $region4: #{tpu_custom_call.1} parent=1 // pred_region
      _
    $region5: #{tpu_custom_call.1} parent=1 // pred_fallthru
      _
    // Predicated region
    $region6: #{tpu_custom_call.1} parent=1 // pred_check
      _
    $region7: #{tpu_custom_call.1} parent=1 // pred_check_branch
      %14 = sbr.rel (0) target = $region9
    $region8: #{tpu_custom_call.1} parent=1 // pred_region
      _
    $region9: #{tpu_custom_call.1} parent=1 // pred_fallthru
      _
    // Predicated region
    $region10: #{tpu_custom_call.1} parent=1 // pred_check
      _
    $region11: #{tpu_custom_call.1} parent=1 // pred_check_branch
      %16 = sbr.rel (0) target = $region13
    $region12: #{tpu_custom_call.1} parent=1 // pred_region
      _
    $region13: #{tpu_custom_call.1} parent=1 // pred_fallthru
      _
    // Predicated region
    $region14: #{tpu_custom_call.1} parent=1 // pred_check
      _
    $region15: #{tpu_custom_call.1} parent=1 // pred_check_branch
      %18 = sbr.rel (0) target = $region17
    $region16: #{tpu_custom_call.1} parent=1 // pred_region
      _
    $region17: #{tpu_custom_call.1} parent=1 // pred_fallthru
      _
    // Predicated region
    $region18: #{tpu_custom_call.1} parent=1 // pred_check
      _
    $region19: #{tpu_custom_call.1} parent=1 // pred_check_branch
      %20 = sbr.rel (0) target = $region21
    $region20: #{tpu_custom_call.1} parent=1 // pred_region
      _
    $region21: #{tpu_custom_call.1} parent=1 // pred_fallthru
      _
    %v21 = vld [vmem:[%s0] sm:$0x3]
    %v22 = vld [vmem:[%s1] sm:$0xff]
    %v23 = vld [vmem:[%s3] sm:$0x1]
    %v25 = vperm.slane %v23, 0
    %vm27 = vcmask 64512
    %v29 = vsel %vm27, %v21, 0
    %31 = vmatpush.msra.mxu0 0.0
    %32 = vmatpush.msra.mxu0 0.0
    %33 = vmatpush.msra.mxu0 0.0
    %34 = vmatpush.msra.mxu0 0.0
    %35 = vmatpush.msra.mxu0 0.0
    %36 = vmatpush.msra.mxu0 0.0
    %37 = vmatpush.msra.mxu0 0.0
    %38 = vmatpush.msra.mxu0 0.0
    %39 = vmatpush.msra.mxu0 0.0
    %40 = vmatpush.msra.mxu0 0.0
    %41 = vmatpush.msra.mxu0 0.0
    %42 = vmatpush.msra.mxu0 0.0
    %43 = vmatpush.msra.mxu0 0.0
    %44 = vmatpush.msra.mxu0 0.0
    %45 = vmatpush.msra.mxu0 0.0
    %46 = vmatpush.msra.mxu0 %v22
    %47 = vmatmul.f32.gmra.mxu0 %v29
    %v48 = vpop.f32.mrf.mxu0
    %v49 = vadd.f32 %v25, %v48
    %50 = vdwg.mxu0
    %v51 = vld [vmem:[%s2] sm:$0xff]
    %v52 = vld [vmem:[%s4] sm:$0x1]
    %v54 = vperm.slane %v52, 0
    %56 = vmatpush.msra.mxu0 0.0
    %57 = vmatpush.msra.mxu0 0.0
    %58 = vmatpush.msra.mxu0 0.0
    %59 = vmatpush.msra.mxu0 0.0
    %60 = vmatpush.msra.mxu0 0.0
    %61 = vmatpush.msra.mxu0 0.0
    %62 = vmatpush.msra.mxu0 0.0
    %63 = vmatpush.msra.mxu0 0.0
    %64 = vmatpush.msra.mxu0 0.0
    %65 = vmatpush.msra.mxu0 0.0
    %66 = vmatpush.msra.mxu0 0.0
    %67 = vmatpush.msra.mxu0 0.0
    %68 = vmatpush.msra.mxu0 0.0
    %69 = vmatpush.msra.mxu0 0.0
    %70 = vmatpush.msra.mxu0 0.0
    %71 = vmatpush.msra.mxu0 %v51
    %72 = vmatmul.f32.gmra.mxu0 %v29
    %v73 = vpop.f32.mrf.mxu0
    %v74 = vadd.f32 %v54, %v73
    %75 = vdwg.mxu0
    %v76 = vtanh.pop %v49
    %v77 = vtanh.pop %v74
    %v78 = vmul.f32 %v76, %v77
    %vm79 = vcmask 25600
    %80 = vst.msk [vmem:[#allocation2] sm:$0x3] %vm79, %v78
    // Predicated region
    $region22: #{tpu_custom_call.1} parent=1 // pred_check
      _
    $region23: #{tpu_custom_call.1} parent=1 // pred_check_branch
      %82 = sbr.rel (0) target = $region25
    $region24: #{tpu_custom_call.1} parent=1 // pred_region
      %84 = vsyncadd [#allocation3], 0
      %s86 = sshll.u32 [#allocation2], 4
      %s87 = int_to_ptr.vmem [resolvable:$true] %s86
      %s88 = sshll.u32 %s5, 4
      %s89 = int_to_ptr.hbm [resolvable:$true] %s88
      %91 = dma.vmem_to_hbm [thread:$0]  %s87, 32, %s89, [#allocation3]
    $region25: #{tpu_custom_call.1} parent=1 // pred_fallthru
      _
    // Predicated region
    $region26: #{tpu_custom_call.1} parent=1 // pred_check
      _
    $region27: #{tpu_custom_call.1} parent=1 // pred_check_branch
      %93 = sbr.rel (0) target = $region29
    $region28: #{tpu_custom_call.1} parent=1 // pred_region
      %95 = dma.done [#allocation3], 32
    $region29: #{tpu_custom_call.1} parent=1 // pred_fallthru
      _
    %96 = vsyncpa [#allocation3], 1

</llo_original>
